<compile_context>
chip_gen: v7x
topology: tpu7x:2x2x1
jax: 0.10.0
libtpu: 0.0.40
codegen_flags: <defaults>
</compile_context>

<pallas_src>
import jax
import jax.numpy as jnp
from jax.experimental import pallas as pl
from jax.experimental.pallas import tpu as pltpu


def critic_kernel(x_ref, w1_ref, b1_ref, w2_ref, b2_ref, w3_ref, b3_ref, o_ref):
    # x tile: (TB, K) f32 -> bf16 for the MXU; accumulate in f32.
    x = x_ref[...].astype(jnp.bfloat16)
    h = jnp.dot(x, w1_ref[...], preferred_element_type=jnp.float32) + b1_ref[...]
    h = jnp.tanh(h)                                   # f32 tanh (v5e-safe)
    h = jnp.dot(h.astype(jnp.bfloat16), w2_ref[...],
                preferred_element_type=jnp.float32) + b2_ref[...]
    h = jnp.tanh(h)                                   # (TB, H) f32
    # Final H->1 projection: VPU multiply + cross-lane reduction (avoids an N=1 MXU matmul),
    # stored lane-dense as a (1, TB) row.
    out = jnp.sum(h * w3_ref[...], axis=-1)[None, :] + b3_ref[...]
    o_ref[...] = out.astype(o_ref.dtype)


def _round_up(n, m):
    return ((n + m - 1) // m) * m


def critic_forward(x, params, tile_b=256):
    """x: (B, input_size) f32.  Returns (B, 1) f32."""
    w1, b1, w2, b2, w3, b3 = params
    B, K = x.shape
    H = w1.shape[1]

    # Layout plumbing in the wrapper (one-time): final projection as a (1, H) row.
    w3_row = w3.reshape(1, H).astype(jnp.float32)

    TB = min(tile_b, _round_up(B, 8))        # batch tile (multiple of 8 for f32 sublanes)
    Bp = _round_up(B, TB)
    if Bp != B:
        x = jnp.pad(x, ((0, Bp - B), (0, 0)))
    num_tiles = Bp // TB

    def resident(a):
        # Same block for every grid step -> DMA'd once, stays in VMEM.
        return pl.BlockSpec(a.shape, lambda i, _s=a.shape: tuple(0 for _ in _s))

    out = pl.pallas_call(
        critic_kernel,
        out_shape=jax.ShapeDtypeStruct((num_tiles, TB), jnp.float32),
        grid=(num_tiles,),
        in_specs=[
            pl.BlockSpec((TB, K), lambda i: (i, 0)),   # x: tiled over batch
            resident(w1), resident(b1),
            resident(w2), resident(b2),
            resident(w3_row), resident(b3),
        ],
        # Lane-dense output: one (1, TB) row per tile.
        out_specs=pl.BlockSpec((1, TB), lambda i: (i, 0)),
        compiler_params=pltpu.CompilerParams(
            dimension_semantics=("parallel",)),        # megacore on v7x, no-op elsewhere
    )(x, w1, b1, w2, b2, w3_row, b3)

    return out.reshape(Bp, 1)[:B]


def init_params(key, input_size, hidden_size=128):
    """Mimics nn.Linear's U(-1/sqrt(fan_in), 1/sqrt(fan_in)); weights stored (in, out).

    w1/w2 are cast to bf16 at init (MXU operands); biases and w3 stay f32
    (bias-add / tanh / final VPU projection run in f32)."""
    ks = jax.random.split(key, 6)

    def linear(kw, kb, fan_in, fan_out):
        bound = fan_in ** -0.5
        w = jax.random.uniform(kw, (fan_in, fan_out), jnp.float32, -bound, bound)
        b = jax.random.uniform(kb, (1, fan_out), jnp.float32, -bound, bound)
        return w, b

    w1, b1 = linear(ks[0], ks[1], input_size, hidden_size)
    w2, b2 = linear(ks[2], ks[3], hidden_size, hidden_size)
    w3, b3 = linear(ks[4], ks[5], hidden_size, 1)
    return (w1.astype(jnp.bfloat16), b1, w2.astype(jnp.bfloat16), b2, w3, b3)


def critic_ref(x, params):
    """Pure-JAX reference using the same bf16-operand / f32-accumulate math."""
    w1, b1, w2, b2, w3, b3 = params
    h = jnp.tanh(jnp.dot(x.astype(jnp.bfloat16), w1,
                         preferred_element_type=jnp.float32) + b1)
    h = jnp.tanh(jnp.dot(h.astype(jnp.bfloat16), w2,
                         preferred_element_type=jnp.float32) + b2)
    return jnp.sum(h * w3.reshape(1, -1), axis=-1, keepdims=True) + b3


if __name__ == "__main__":
    key = jax.random.PRNGKey(0)
    k_x1, k_x2, k_p = jax.random.split(key, 3)

    input_size, hidden_size = 32, 128
    params = init_params(k_p, input_size, hidden_size)

    # Small demo batch (single tile, grid=(1,)).
    x_small = jax.random.normal(k_x1, (8, input_size), jnp.float32)
    out_small = jax.block_until_ready(critic_forward(x_small, params))
    ref_small = critic_ref(x_small, params)
    assert out_small.shape == (8, 1)
    assert jnp.allclose(out_small, ref_small, atol=2e-3, rtol=2e-3)

    # Larger batch exercising the tiled/pipelined path with padding (grid=(2,)).
    x_big = jax.random.normal(k_x2, (300, input_size), jnp.float32)
    out_big = jax.block_until_ready(critic_forward(x_big, params))
    ref_big = critic_ref(x_big, params)
    assert out_big.shape == (300, 1)
    assert jnp.allclose(out_big, ref_big, atol=2e-3, rtol=2e-3)

    print("KERNEL_OK")
</pallas_src>

<mosaic_0001>
module attributes {stable_mosaic.version = 11 : i64} {
  func.func @critic_kernel(%arg0: i32, %arg1: memref<8x32xf32, #tpu.memory_space<vmem>>, %arg2: memref<32x128xbf16, #tpu.memory_space<vmem>>, %arg3: memref<1x128xf32, #tpu.memory_space<vmem>>, %arg4: memref<128x128xbf16, #tpu.memory_space<vmem>>, %arg5: memref<1x128xf32, #tpu.memory_space<vmem>>, %arg6: memref<1x128xf32, #tpu.memory_space<vmem>>, %arg7: memref<1x1xf32, #tpu.memory_space<vmem>>, %arg8: memref<1x8xf32, #tpu.memory_space<vmem>>) attributes {dimension_semantics = [#tpu.dimension_semantics<parallel>], iteration_bounds = array<i64: 1>, scalar_prefetch = 0 : i64, scratch_operands = 0 : i64, tpu.core_type = #tpu.core_type<tc>, window_params = [{transform_indices = @transform_0, window_bounds = array<i64: 8, 32>}, {pipeline_mode = #tpu.pipeline_mode<synchronous>, transform_indices = @transform_1, window_bounds = array<i64: 32, 128>}, {pipeline_mode = #tpu.pipeline_mode<synchronous>, transform_indices = @transform_2, window_bounds = array<i64: 1, 128>}, {pipeline_mode = #tpu.pipeline_mode<synchronous>, transform_indices = @transform_3, window_bounds = array<i64: 128, 128>}, {pipeline_mode = #tpu.pipeline_mode<synchronous>, transform_indices = @transform_4, window_bounds = array<i64: 1, 128>}, {pipeline_mode = #tpu.pipeline_mode<synchronous>, transform_indices = @transform_5, window_bounds = array<i64: 1, 128>}, {pipeline_mode = #tpu.pipeline_mode<synchronous>, transform_indices = @transform_6, window_bounds = array<i64: 1, 1>}, {transform_indices = @transform_7, window_bounds = array<i64: 1, 8>}]} {
    %c0 = arith.constant 0 : index
    %c0_0 = arith.constant 0 : index
    %0 = vector.load %arg1[%c0, %c0_0] : memref<8x32xf32, #tpu.memory_space<vmem>>, vector<8x32xf32>
    %1 = arith.truncf %0 : vector<8x32xf32> to vector<8x32xbf16>
    %c0_1 = arith.constant 0 : index
    %c0_2 = arith.constant 0 : index
    %2 = vector.load %arg2[%c0_1, %c0_2] : memref<32x128xbf16, #tpu.memory_space<vmem>>, vector<32x128xbf16>
    %cst = arith.constant dense<0.000000e+00> : vector<8x128xf32>
    %3 = tpu.matmul %1, %2, %cst {dimension_numbers = #tpu.dot_dimension_numbers<[1], [0], [0], [1], [0, 0, 1, 1], [], []>} : vector<8x32xbf16>, vector<32x128xbf16>, vector<8x128xf32> -> vector<8x128xf32>
    %c0_3 = arith.constant 0 : index
    %c0_4 = arith.constant 0 : index
    %4 = vector.load %arg3[%c0_3, %c0_4] : memref<1x128xf32, #tpu.memory_space<vmem>>, vector<1x128xf32>
    %5 = vector.broadcast %4 : vector<1x128xf32> to vector<8x128xf32>
    %6 = arith.addf %3, %5 : vector<8x128xf32>
    %7 = math.tanh %6 : vector<8x128xf32>
    %8 = arith.truncf %7 : vector<8x128xf32> to vector<8x128xbf16>
    %c0_5 = arith.constant 0 : index
    %c0_6 = arith.constant 0 : index
    %9 = vector.load %arg4[%c0_5, %c0_6] : memref<128x128xbf16, #tpu.memory_space<vmem>>, vector<128x128xbf16>
    %cst_7 = arith.constant dense<0.000000e+00> : vector<8x128xf32>
    %10 = tpu.matmul %8, %9, %cst_7 {dimension_numbers = #tpu.dot_dimension_numbers<[1], [0], [0], [1], [0, 0, 1, 1], [], []>} : vector<8x128xbf16>, vector<128x128xbf16>, vector<8x128xf32> -> vector<8x128xf32>
    %c0_8 = arith.constant 0 : index
    %c0_9 = arith.constant 0 : index
    %11 = vector.load %arg5[%c0_8, %c0_9] : memref<1x128xf32, #tpu.memory_space<vmem>>, vector<1x128xf32>
    %12 = vector.broadcast %11 : vector<1x128xf32> to vector<8x128xf32>
    %13 = arith.addf %10, %12 : vector<8x128xf32>
    %14 = math.tanh %13 : vector<8x128xf32>
    %c0_10 = arith.constant 0 : index
    %c0_11 = arith.constant 0 : index
    %15 = vector.load %arg6[%c0_10, %c0_11] : memref<1x128xf32, #tpu.memory_space<vmem>>, vector<1x128xf32>
    %16 = vector.broadcast %15 : vector<1x128xf32> to vector<8x128xf32>
    %17 = arith.mulf %14, %16 : vector<8x128xf32>
    %cst_12 = arith.constant dense<0.000000e+00> : vector<8xf32>
    %18 = vector.multi_reduction <add>, %17, %cst_12 [1] : vector<8x128xf32> to vector<8xf32>
    %19 = vector.shape_cast %18 : vector<8xf32> to vector<1x8xf32>
    %c0_13 = arith.constant 0 : index
    %c0_14 = arith.constant 0 : index
    %20 = vector.load %arg7[%c0_13, %c0_14] : memref<1x1xf32, #tpu.memory_space<vmem>>, vector<1x1xf32>
    %21 = vector.broadcast %20 : vector<1x1xf32> to vector<1x8xf32>
    %22 = arith.addf %19, %21 : vector<1x8xf32>
    %c0_15 = arith.constant 0 : index
    %c0_16 = arith.constant 0 : index
    %23 = vector.load %arg8[%c0_15, %c0_16] : memref<1x8xf32, #tpu.memory_space<vmem>>, vector<1x8xf32>
    tpu.vector_store %arg8[%c0_15, %c0_16], %22 {strides = array<i32>} : memref<1x8xf32, #tpu.memory_space<vmem>>, vector<1x8xf32>,
    return
  }
  func.func @transform_0(%arg0: i32) -> (i32, i32) {
    %c0_i32 = arith.constant 0 : i32
    %c0_i32_0 = arith.constant 0 : i32
    return %arg0, %c0_i32 : i32, i32
  }
  func.func @transform_1(%arg0: i32) -> (i32, i32) {
    %c0_i32 = arith.constant 0 : i32
    %c0_i32_0 = arith.constant 0 : i32
    %c0_i32_1 = arith.constant 0 : i32
    return %c0_i32, %c0_i32_0 : i32, i32
  }
  func.func @transform_2(%arg0: i32) -> (i32, i32) {
    %c0_i32 = arith.constant 0 : i32
    %c0_i32_0 = arith.constant 0 : i32
    %c0_i32_1 = arith.constant 0 : i32
    return %c0_i32, %c0_i32_0 : i32, i32
  }
  func.func @transform_3(%arg0: i32) -> (i32, i32) {
    %c0_i32 = arith.constant 0 : i32
    %c0_i32_0 = arith.constant 0 : i32
    %c0_i32_1 = arith.constant 0 : i32
    return %c0_i32, %c0_i32_0 : i32, i32
  }
  func.func @transform_4(%arg0: i32) -> (i32, i32) {
    %c0_i32 = arith.constant 0 : i32
    %c0_i32_0 = arith.constant 0 : i32
    %c0_i32_1 = arith.constant 0 : i32
    return %c0_i32, %c0_i32_0 : i32, i32
  }
  func.func @transform_5(%arg0: i32) -> (i32, i32) {
    %c0_i32 = arith.constant 0 : i32
    %c0_i32_0 = arith.constant 0 : i32
    %c0_i32_1 = arith.constant 0 : i32
    return %c0_i32, %c0_i32_0 : i32, i32
  }
  func.func @transform_6(%arg0: i32) -> (i32, i32) {
    %c0_i32 = arith.constant 0 : i32
    %c0_i32_0 = arith.constant 0 : i32
    %c0_i32_1 = arith.constant 0 : i32
    return %c0_i32, %c0_i32_0 : i32, i32
  }
  func.func @transform_7(%arg0: i32) -> (i32, i32) {
    %c0_i32 = arith.constant 0 : i32
    %c0_i32_0 = arith.constant 0 : i32
    return %arg0, %c0_i32 : i32, i32
  }
}

</mosaic_0001>

<llo_original>
// kernel: tpu_custom_call.1
$region0: #{tpu_custom_call.1}
  #allocation0 [shape = 'u32[]', space=smem, size = 0x4, offset = 0x4, fixed_abs, tag = 'smem constant byte address 0x4 - core index']
  #allocation1 [shape = 'u32[144,128]{1,0:T(1,128)}', space=vmem, size = 0x12000, scoped, tag = 'internal scratch']
  #allocation2 [shape = 'f32[1,1]{1,0:T(1,128)S(1)}', space=vmem, size = 0x200, scoped, tag = 'scoped memory for tpu_custom_call.1']
  %s0 = inlined_call_operand.hbm [shape: f32[8,32], index: 0, kind: input, shape index: {}]
  %s1 = inlined_call_operand.hbm [shape: bf16[32,128], index: 1, kind: input, shape index: {}]
  %s2 = inlined_call_operand.vmem [shape: f32[1,128], index: 2, kind: input, shape index: {}]
  %s3 = inlined_call_operand.hbm [shape: bf16[128,128], index: 3, kind: input, shape index: {}]
  %s4 = inlined_call_operand.vmem [shape: f32[1,128], index: 4, kind: input, shape index: {}]
  %s5 = inlined_call_operand.vmem [shape: f32[1,128], index: 5, kind: input, shape index: {}]
  %s6 = inlined_call_operand.<no memory space> [shape: f32[1,1], index: 6, kind: input, shape index: {}]
  %s7 = inlined_call_operand.hbm [shape: f32[1,8], index: 7, kind: output, shape index: {}]
  %s8 = sld [smem:[#allocation0]]
  $region50: #{tpu_custom_call.1} parent=0
    _
  %s10 = ssub.s32 1, %s8
  %s11 = scalar_select 0, %s10, %s8
  %v12 = vstv %s6
  %13 = vst [vmem:[#allocation2] sm:$0x1] %v12
  $region1: #{tpu_custom_call.1} parent=0
    #allocation3 [shape = 'u8[4096]{0}', space=vmem, size = 0x1000, scoped, tag = 'input window, operand 0, single buffered']
    #allocation4 [shape = 's32[1]{0}', space=sflag, size = 0x4, scoped, tag = 'scoped memory for tpu_custom_call.1']
    #allocation5 [shape = 's32[1]{0}', space=sflag, size = 0x4, scoped, tag = 'scoped memory for tpu_custom_call.1']
    #allocation6 [shape = 'u8[8192]{0}', space=vmem, size = 0x2000, scoped, tag = 'input window, operand 1, single buffered']
    #allocation7 [shape = 's32[1]{0}', space=sflag, size = 0x4, scoped, tag = 'scoped memory for tpu_custom_call.1']
    #allocation8 [shape = 'u8[32768]{0}', space=vmem, size = 0x8000, scoped, tag = 'input window, operand 3, single buffered']
    #allocation9 [shape = 'u8[512]{0}', space=vmem, size = 0x400, scoped, tag = 'output window, operand 0, single buffered']
    %14 = vsyncpa [#allocation4], 0
    %15 = vsyncpa [#allocation7], 0
    %16 = vsyncpa [#allocation5], 0
    // Predicated region
    $region2: #{tpu_custom_call.1} parent=1 // pred_check
      _
    $region3: #{tpu_custom_call.1} parent=1 // pred_check_branch
      %18 = sbr.rel (0) target = $region5
    $region4: #{tpu_custom_call.1} parent=1 // pred_region
      %s20 = ssub.s32 128, 128
      %21 = vsyncadd [#allocation4], %s20
      %s23 = sshll.u32 [#allocation3], 4
      %s24 = int_to_ptr.vmem [resolvable:$true] %s23
      %26 = dma.hbm_to_vmem [thread:$0]  %s0, 128, %s24, [#allocation4]
    $region5: #{tpu_custom_call.1} parent=1 // pred_fallthru
      _
    // Predicated region
    $region6: #{tpu_custom_call.1} parent=1 // pred_check
      _
    $region7: #{tpu_custom_call.1} parent=1 // pred_check_branch
      %28 = sbr.rel (0) target = $region9
    $region8: #{tpu_custom_call.1} parent=1 // pred_region
      %s30 = ssub.s32 256, 256
      %31 = vsyncadd [#allocation7], %s30
      %s32 = sshll.u32 [#allocation6], 4
      %s33 = int_to_ptr.vmem [resolvable:$true] %s32
      %38 = dma.hbm_to_vmem [thread:$0]  %s1, 256, %s33, [#allocation7], 64, 64, 4
    $region9: #{tpu_custom_call.1} parent=1 // pred_fallthru
      _
    // Predicated region
    $region10: #{tpu_custom_call.1} parent=1 // pred_check
      _
    $region11: #{tpu_custom_call.1} parent=1 // pred_check_branch
      %40 = sbr.rel (0) target = $region13
    $region12: #{tpu_custom_call.1} parent=1 // pred_region
      _
    $region13: #{tpu_custom_call.1} parent=1 // pred_fallthru
      _
    // Predicated region
    $region14: #{tpu_custom_call.1} parent=1 // pred_check
      _
    $region15: #{tpu_custom_call.1} parent=1 // pred_check_branch
      %42 = sbr.rel (0) target = $region17
    $region16: #{tpu_custom_call.1} parent=1 // pred_region
      %s44 = ssub.s32 1024, 1024
      %45 = vsyncadd [#allocation7], %s44
      %s46 = sshll.u32 [#allocation8], 4
      %s47 = int_to_ptr.vmem [resolvable:$true] %s46
      %52 = dma.hbm_to_vmem [thread:$0]  %s3, 1024, %s47, [#allocation7], 64, 64, 4
    $region17: #{tpu_custom_call.1} parent=1 // pred_fallthru
      _
    // Predicated region
    $region18: #{tpu_custom_call.1} parent=1 // pred_check
      _
    $region19: #{tpu_custom_call.1} parent=1 // pred_check_branch
      %54 = sbr.rel (0) target = $region21
    $region20: #{tpu_custom_call.1} parent=1 // pred_region
      _
    $region21: #{tpu_custom_call.1} parent=1 // pred_fallthru
      _
    // Predicated region
    $region22: #{tpu_custom_call.1} parent=1 // pred_check
      _
    $region23: #{tpu_custom_call.1} parent=1 // pred_check_branch
      %56 = sbr.rel (0) target = $region25
    $region24: #{tpu_custom_call.1} parent=1 // pred_region
      _
    $region25: #{tpu_custom_call.1} parent=1 // pred_fallthru
      _
    // Predicated region
    $region26: #{tpu_custom_call.1} parent=1 // pred_check
      _
    $region27: #{tpu_custom_call.1} parent=1 // pred_check_branch
      %58 = sbr.rel (0) target = $region29
    $region28: #{tpu_custom_call.1} parent=1 // pred_region
      _
    $region29: #{tpu_custom_call.1} parent=1 // pred_fallthru
      _
    // Predicated region
    $region30: #{tpu_custom_call.1} parent=1 // pred_check
      _
    $region31: #{tpu_custom_call.1} parent=1 // pred_check_branch
      %60 = sbr.rel (0) target = $region33
    $region32: #{tpu_custom_call.1} parent=1 // pred_region
      %61 = dma.done [#allocation4], 128
    $region33: #{tpu_custom_call.1} parent=1 // pred_fallthru
      _
    // Predicated region
    $region34: #{tpu_custom_call.1} parent=1 // pred_check
      _
    $region35: #{tpu_custom_call.1} parent=1 // pred_check_branch
      %63 = sbr.rel (0) target = $region37
    $region36: #{tpu_custom_call.1} parent=1 // pred_region
      %64 = dma.done [#allocation7], 256
    $region37: #{tpu_custom_call.1} parent=1 // pred_fallthru
      _
    // Predicated region
    $region38: #{tpu_custom_call.1} parent=1 // pred_check
      _
    $region39: #{tpu_custom_call.1} parent=1 // pred_check_branch
      %66 = sbr.rel (0) target = $region41
    $region40: #{tpu_custom_call.1} parent=1 // pred_region
      %67 = dma.done [#allocation7], 1024
    $region41: #{tpu_custom_call.1} parent=1 // pred_fallthru
      _
    %v69 = vld [vmem:[#allocation3] sm:$0xff]
    %v70 = vpack.c.bf16 %v69, %v69
    %v71 = vld [vmem:[#allocation6] sm:$0xf]
    %v72 = vld [vmem:[#allocation6 + $0x4] sm:$0xf]
    %v73 = vld [vmem:[#allocation6 + $0x8] sm:$0xf]
    %v74 = vld [vmem:[#allocation6 + $0xc] sm:$0xf]
    %v75 = vld [vmem:[%s2] sm:$0x1]
    %v77 = vlaneseq
    %v78 = vshrl.u32 %v77, 7
    %v79 = vsub.s32 0, %v78
    %v80 = vrot.slane %v75, %v79
    %v86 = vunpack.c.l.b16 %v71
    %v87 = vunpack.c.l.b16 %v72
    %v88 = vunpack.c.l.b16 %v73
    %v89 = vunpack.c.l.b16 %v74
    %v90 = vpack.c.b16 %v87, %v86
    %v91 = vpack.c.b16 %v89, %v88
    %vm94 = vcmask 261120
    %v96 = vsel %vm94, %v70, 0
    %98 = vmatprep.subr.bf16.mxu0 0
    %99 = vmatpush1.bf16.msra.mxu0 %v90
    %100 = vmatprep.subr.bf16.mxu0 0
    %101 = vmatpush1.bf16.msra.mxu0 %v91
    %102 = vmatprep.subr.bf16.mxu0 0
    %103 = vmatpush1.bf16.msra.mxu0 0
    %104 = vmatprep.subr.bf16.mxu0 0
    %105 = vmatpush1.bf16.msra.mxu0 0
    %106 = vmatprep.subr.bf16.mxu0 0
    %107 = vmatpush1.bf16.msra.mxu0 0
    %108 = vmatprep.subr.bf16.mxu0 0
    %109 = vmatpush1.bf16.msra.mxu0 0
    %110 = vmatprep.subr.bf16.mxu0 0
    %111 = vmatpush1.bf16.msra.mxu0 0
    %112 = vmatprep.subr.bf16.mxu0 0
    %113 = vmatpush1.bf16.msra.mxu0 0
    %114 = vmatprep.subr.bf16.mxu0 0
    %115 = vmatpush1.bf16.msra.mxu0 0
    %116 = vmatprep.subr.bf16.mxu0 0
    %117 = vmatpush1.bf16.msra.mxu0 0
    %118 = vmatprep.subr.bf16.mxu0 0
    %119 = vmatpush1.bf16.msra.mxu0 0
    %120 = vmatprep.subr.bf16.mxu0 0
    %121 = vmatpush1.bf16.msra.mxu0 0
    %122 = vmatprep.subr.bf16.mxu0 0
    %123 = vmatpush1.bf16.msra.mxu0 0
    %124 = vmatprep.subr.bf16.mxu0 0
    %125 = vmatpush1.bf16.msra.mxu0 0
    %126 = vmatprep.subr.bf16.mxu0 0
    %127 = vmatpush1.bf16.msra.mxu0 0
    %128 = vmatprep.subr.bf16.mxu0 0
    %129 = vmatpush1.bf16.msra.mxu0 0
    %130 = vmatprep.mubr.bf16.mxu0 0
    %131 = vmatmul.mubr.bf16.gmra.mrb[0].mxu0 %v96
    %v132 = vpop.f32.mrb[0].mxu0
    %v133 = vadd.f32 %v80, %v132
    %v134 = vpop.f32.mrb[0].mxu0
    %v135 = vpop.f32.mrb[0].mxu0
    %v136 = vpop.f32.mrb[0].mxu0
    %137 = vdwg.mxu0
    %v138 = vtanh.pop %v133
    %v139 = vpack.c.bf16 %v138, %v138
    %v140 = vld [vmem:[#allocation8] sm:$0xf]
    %v141 = vld [vmem:[#allocation8 + $0x4] sm:$0xf]
    %v142 = vld [vmem:[#allocation8 + $0x8] sm:$0xf]
    %v143 = vld [vmem:[#allocation8 + $0xc] sm:$0xf]
    %v144 = vld [vmem:[#allocation8 + $0x10] sm:$0xf]
    %v145 = vld [vmem:[#allocation8 + $0x14] sm:$0xf]
    %v146 = vld [vmem:[#allocation8 + $0x18] sm:$0xf]
    %v147 = vld [vmem:[#allocation8 + $0x1c] sm:$0xf]
    %v148 = vld [vmem:[#allocation8 + $0x20] sm:$0xf]
    %v149 = vld [vmem:[#allocation8 + $0x24] sm:$0xf]
    %v150 = vld [vmem:[#allocation8 + $0x28] sm:$0xf]
    %v151 = vld [vmem:[#allocation8 + $0x2c] sm:$0xf]
    %v152 = vld [vmem:[#allocation8 + $0x30] sm:$0xf]
    %v153 = vld [vmem:[#allocation8 + $0x34] sm:$0xf]
    %v154 = vld [vmem:[#allocation8 + $0x38] sm:$0xf]
    %v155 = vld [vmem:[#allocation8 + $0x3c] sm:$0xf]
    %v156 = vld [vmem:[%s4] sm:$0x1]
    %v158 = vlaneseq
    %v159 = vshrl.u32 %v158, 7
    %v160 = vsub.s32 0, %v159
    %v161 = vrot.slane %v156, %v160
    %v179 = vunpack.c.l.b16 %v140
    %v180 = vunpack.c.l.b16 %v141
    %v181 = vunpack.c.l.b16 %v142
    %v182 = vunpack.c.l.b16 %v143
    %v183 = vunpack.c.l.b16 %v144
    %v184 = vunpack.c.l.b16 %v145
    %v185 = vunpack.c.l.b16 %v146
    %v186 = vunpack.c.l.b16 %v147
    %v187 = vunpack.c.l.b16 %v148
    %v188 = vunpack.c.l.b16 %v149
    %v189 = vunpack.c.l.b16 %v150
    %v190 = vunpack.c.l.b16 %v151
    %v191 = vunpack.c.l.b16 %v152
    %v192 = vunpack.c.l.b16 %v153
    %v193 = vunpack.c.l.b16 %v154
    %v194 = vunpack.c.l.b16 %v155
    %v195 = vpack.c.b16 %v180, %v179
    %v196 = vpack.c.b16 %v182, %v181
    %v197 = vpack.c.b16 %v184, %v183
    %v198 = vpack.c.b16 %v186, %v185
    %v199 = vpack.c.b16 %v188, %v187
    %v200 = vpack.c.b16 %v190, %v189
    %v201 = vpack.c.b16 %v192, %v191
    %v202 = vpack.c.b16 %v194, %v193
    %211 = vmatprep.subr.bf16.mxu0 0
    %212 = vmatpush1.bf16.msra.mxu0 %v195
    %213 = vmatprep.subr.bf16.mxu0 0
    %214 = vmatpush1.bf16.msra.mxu0 %v196
    %215 = vmatprep.subr.bf16.mxu0 0
    %216 = vmatpush1.bf16.msra.mxu0 %v197
    %217 = vmatprep.subr.bf16.mxu0 0
    %218 = vmatpush1.bf16.msra.mxu0 %v198
    %219 = vmatprep.subr.bf16.mxu0 0
    %220 = vmatpush1.bf16.msra.mxu0 %v199
    %221 = vmatprep.subr.bf16.mxu0 0
    %222 = vmatpush1.bf16.msra.mxu0 %v200
    %223 = vmatprep.subr.bf16.mxu0 0
    %224 = vmatpush1.bf16.msra.mxu0 %v201
    %225 = vmatprep.subr.bf16.mxu0 0
    %226 = vmatpush1.bf16.msra.mxu0 %v202
    %227 = vmatprep.subr.bf16.mxu0 0
    %228 = vmatpush1.bf16.msra.mxu0 0
    %229 = vmatprep.subr.bf16.mxu0 0
    %230 = vmatpush1.bf16.msra.mxu0 0
    %231 = vmatprep.subr.bf16.mxu0 0
    %232 = vmatpush1.bf16.msra.mxu0 0
    %233 = vmatprep.subr.bf16.mxu0 0
    %234 = vmatpush1.bf16.msra.mxu0 0
    %235 = vmatprep.subr.bf16.mxu0 0
    %236 = vmatpush1.bf16.msra.mxu0 0
    %237 = vmatprep.subr.bf16.mxu0 0
    %238 = vmatpush1.bf16.msra.mxu0 0
    %239 = vmatprep.subr.bf16.mxu0 0
    %240 = vmatpush1.bf16.msra.mxu0 0
    %241 = vmatprep.subr.bf16.mxu0 0
    %242 = vmatpush1.bf16.msra.mxu0 0
    %243 = vmatprep.mubr.bf16.mxu0 0
    %244 = vmatmul.mubr.bf16.gmra.mrb[0].mxu0 %v139
    %v245 = vpop.f32.mrb[0].mxu0
    %v246 = vadd.f32 %v161, %v245
    %v247 = vpop.f32.mrb[0].mxu0
    %v248 = vpop.f32.mrb[0].mxu0
    %v249 = vpop.f32.mrb[0].mxu0
    %250 = vdwg.mxu0
    %v251 = vtanh.pop %v246
    %v252 = vld [vmem:[%s5] sm:$0x1]
    %v254 = vlaneseq
    %v255 = vshrl.u32 %v254, 7
    %v256 = vsub.s32 0, %v255
    %v257 = vrot.slane %v252, %v256
    %v259 = vmul.f32 %v251, %v257
    %260 = vadd.xlane.f32.xlu0 %v259
    %v261 = vpop.xlane.xlu0 %260
    %v262 = vld [vmem:[#allocation2] sm:$0x1]
    %264 = vset.pattern.permute.xlu0 0
    %265 = vperm.xlu0 %264, %v262
    %v266 = vpop.permute.xlu0 %265
    %v268 = vlaneseq
    %v269 = vshrl.u32 %v268, 7
    %v270 = vsub.s32 0, %v269
    %v271 = vrot.slane %v266, %v270
    %v272 = vadd.f32 %v261, %v271
    %v274 = vlaneseq
    %v275 = vand.u32 %v274, 127
    %v276 = vlaneseq
    %v277 = vshrl.u32 %v276, 7
    %v278 = vsub.s32 %v275, %v277
    %v279 = vrot.slane %v272, %v278
    %vm281 = vcmask 57344
    %282 = vst.msk [vmem:[#allocation9] sm:$0x1] %vm281, %v279
    // Predicated region
    $region42: #{tpu_custom_call.1} parent=1 // pred_check
      _
    $region43: #{tpu_custom_call.1} parent=1 // pred_check_branch
      %284 = sbr.rel (0) target = $region45
    $region44: #{tpu_custom_call.1} parent=1 // pred_region
      %s286 = ssub.s32 16, 16
      %287 = vsyncadd [#allocation5], %s286
      %s289 = sshll.u32 [#allocation9], 4
      %s290 = int_to_ptr.vmem [resolvable:$true] %s289
      %292 = dma.vmem_to_hbm [thread:$0]  %s290, 16, %s7, [#allocation5]
    $region45: #{tpu_custom_call.1} parent=1 // pred_fallthru
      _
    // Predicated region
    $region46: #{tpu_custom_call.1} parent=1 // pred_check
      _
    $region47: #{tpu_custom_call.1} parent=1 // pred_check_branch
      %294 = sbr.rel (0) target = $region49
    $region48: #{tpu_custom_call.1} parent=1 // pred_region
      %295 = dma.done [#allocation5], 16
    $region49: #{tpu_custom_call.1} parent=1 // pred_fallthru
      _
    %296 = vsyncpa [#allocation4], 1
    %297 = vsyncpa [#allocation7], 1
    %298 = vsyncpa [#allocation5], 1

</llo_original>
